<compile_context>
chip_gen: v7x
topology: tpu7x:2x2x1
jax: 0.10.0
libtpu: 0.0.40
codegen_flags: <defaults>
</compile_context>

<pallas_src>
import jax
import jax.numpy as jnp
from jax.experimental import pallas as pl
from jax.experimental.pallas import tpu as pltpu


# --------------------------------------------------------------------------
# Fast path: the actual semantics of Imod — return the inputs untouched.
# --------------------------------------------------------------------------
def imod(*args):
    """Pallas/JAX equivalent of Imod.forward(*args): returns args unchanged.

    Handles non-array Python objects the same way the PyTorch module does
    (they are simply passed through).
    """
    return tuple(args)


# --------------------------------------------------------------------------
# Optional materializing path: identity via a Pallas HBM->VMEM->HBM copy.
# --------------------------------------------------------------------------
def _identity_kernel(x_ref, o_ref):
    o_ref[...] = x_ref[...]


def _round_up(a: int, b: int) -> int:
    return -(-a // b) * b


# Lane-dense candidates for the flattened last dimension (all multiples of 128).
_LANE_CANDIDATES = (2048, 1024, 512, 256, 128)
# ~2 MiB tiles: with double-buffered input + output this is ~8 MiB of scoped
# VMEM, comfortably under the default limit on v5e/v6e/v7x.
_TARGET_TILE_BYTES = 2 * 1024 * 1024


def _identity_copy_one(x: jax.Array) -> jax.Array:
    """Identity of a single array, materialized through a Pallas copy kernel."""
    orig_shape = x.shape
    dtype = x.dtype
    n = x.size

    # Degenerate / ragged sizes: identity is free — just return the input.
    # (No host-side pad+slice copies; they tripled HBM traffic in the old code.)
    if n == 0 or n % 128 != 0:
        return x

    itemsize = jnp.dtype(dtype).itemsize
    pack = max(1, 4 // itemsize)          # elements per 32-bit word (sublane packing)
    sub = 8 * pack                        # native sublane tile: 8 f32, 16 bf16, 32 int8

    # Pick the widest lane-dense view that still leaves at least one native
    # sublane tile worth of rows; otherwise fall back to 128 lanes.
    lane = 128
    for cand in _LANE_CANDIDATES:
        if n % cand == 0 and (n // cand) >= sub:
            lane = cand
            break
    rows = n // lane
    x2d = x.reshape(rows, lane)

    # Tile rows: large dtype-aware tiles, cdiv grid (partial last block is fine
    # because the block shape stays (sub*k, 128*m)-aligned).
    tm_bytes = max(sub, _TARGET_TILE_BYTES // (lane * itemsize))
    tm_bytes = max(sub, (tm_bytes // sub) * sub)
    if rows <= sub:
        tm = rows                         # block == full row extent (always legal)
    else:
        tm = min(tm_bytes, _round_up(rows, sub))
    grid = (pl.cdiv(rows, tm),)

    out2d = pl.pallas_call(
        _identity_kernel,
        out_shape=jax.ShapeDtypeStruct((rows, lane), dtype),
        grid_spec=pltpu.PrefetchScalarGridSpec(
            num_scalar_prefetch=0,
            grid=grid,
            in_specs=[pl.BlockSpec((tm, lane), lambda i: (i, 0))],
            out_specs=pl.BlockSpec((tm, lane), lambda i: (i, 0)),
        ),
        # "parallel" shards the row grid across both TensorCores on v7x
        # (no-op on single-TC v5e/v6e).
        compiler_params=pltpu.CompilerParams(
            dimension_semantics=("parallel",)
        ),
    )(x2d)

    return out2d.reshape(orig_shape)


def imod_materialize(*args):
    """Like imod(), but array args are copied through the Pallas kernel so the
    outputs live in fresh buffers. Non-array args pass through unchanged."""
    return tuple(
        _identity_copy_one(a) if isinstance(a, jax.Array) else a for a in args
    )


if __name__ == "__main__":
    key = jax.random.PRNGKey(0)
    k1, k2, k3, k4 = jax.random.split(key, 4)

    # Small example inputs consistent with arbitrary Imod usage.
    x = jax.random.normal(k1, (2, 4, 16, 16), dtype=jnp.float32)   # 2048 elems
    y = jax.random.normal(k2, (2, 8, 32), dtype=jnp.float32)       # 512 elems
    z = jax.random.normal(k3, (32,), dtype=jnp.float32)            # ragged -> no-copy path
    w = jax.random.normal(k4, (8, 64, 128)).astype(jnp.bfloat16)   # packed dtype

    # 1) True Imod semantics: zero-cost pass-through, including non-tensor args.
    out = imod(x, y, z, w, "not_a_tensor", 3)
    assert isinstance(out, tuple) and len(out) == 6
    assert out[0] is x and out[1] is y and out[2] is z and out[3] is w
    assert out[4] == "not_a_tensor" and out[5] == 3

    # 2) Pallas copy-kernel path (materialized identity).
    out_m = imod_materialize(x, y, z, w)
    out_m = jax.block_until_ready(out_m)
    assert isinstance(out_m, tuple) and len(out_m) == 4
    for inp, o in zip((x, y, z, w), out_m):
        assert o.shape == inp.shape and o.dtype == inp.dtype
        assert bool(jnp.all(o == inp))

    print("KERNEL_OK")
</pallas_src>

<mosaic_0001>
module attributes {stable_mosaic.version = 11 : i64} {
  func.func @_identity_kernel(%arg0: i32, %arg1: memref<8x256xf32, #tpu.memory_space<vmem>>, %arg2: memref<8x256xf32, #tpu.memory_space<vmem>>) attributes {dimension_semantics = [#tpu.dimension_semantics<parallel>], iteration_bounds = array<i64: 1>, scalar_prefetch = 0 : i64, scratch_operands = 0 : i64, tpu.core_type = #tpu.core_type<tc>, window_params = [{transform_indices = @transform_0, window_bounds = array<i64: 8, 256>}, {transform_indices = @transform_1, window_bounds = array<i64: 8, 256>}]} {
    %c0 = arith.constant 0 : index
    %c0_0 = arith.constant 0 : index
    %0 = vector.load %arg1[%c0, %c0_0] : memref<8x256xf32, #tpu.memory_space<vmem>>, vector<8x256xf32>
    %c0_1 = arith.constant 0 : index
    %c0_2 = arith.constant 0 : index
    %1 = vector.load %arg2[%c0_1, %c0_2] : memref<8x256xf32, #tpu.memory_space<vmem>>, vector<8x256xf32>
    tpu.vector_store %arg2[%c0_1, %c0_2], %0 {strides = array<i32>} : memref<8x256xf32, #tpu.memory_space<vmem>>, vector<8x256xf32>,
    return
  }
  func.func @transform_0(%arg0: i32) -> (i32, i32) {
    %c0_i32 = arith.constant 0 : i32
    %c0_i32_0 = arith.constant 0 : i32
    return %arg0, %c0_i32 : i32, i32
  }
  func.func @transform_1(%arg0: i32) -> (i32, i32) {
    %c0_i32 = arith.constant 0 : i32
    %c0_i32_0 = arith.constant 0 : i32
    return %arg0, %c0_i32 : i32, i32
  }
}

</mosaic_0001>

<llo_original>
// kernel: tpu_custom_call.1
$region0: #{tpu_custom_call.1}
  #allocation0 [shape = 'u32[]', space=smem, size = 0x4, offset = 0x4, fixed_abs, tag = 'smem constant byte address 0x4 - core index']
  #allocation1 [shape = 'u32[144,128]{1,0:T(1,128)}', space=vmem, size = 0x12000, scoped, tag = 'internal scratch']
  %s0 = inlined_call_operand.hbm [shape: f32[8,256], index: 0, kind: input, shape index: {}]
  %s1 = inlined_call_operand.hbm [shape: f32[8,256], index: 1, kind: output, shape index: {}]
  %s2 = sld [smem:[#allocation0]]
  $region18: #{tpu_custom_call.1} parent=0
    _
  %s4 = ssub.s32 1, %s2
  %s5 = scalar_select 0, %s4, %s2
  $region1: #{tpu_custom_call.1} parent=0
    #allocation2 [shape = 'u8[8192]{0}', space=vmem, size = 0x2000, scoped, tag = 'input window, operand 0, single buffered']
    #allocation3 [shape = 's32[1]{0}', space=sflag, size = 0x4, scoped, tag = 'scoped memory for tpu_custom_call.1']
    #allocation4 [shape = 's32[1]{0}', space=sflag, size = 0x4, scoped, tag = 'scoped memory for tpu_custom_call.1']
    #allocation5 [shape = 'u8[8192]{0}', space=vmem, size = 0x2000, scoped, tag = 'output window, operand 0, single buffered']
    %6 = vsyncpa [#allocation3], 0
    %7 = vsyncpa [#allocation4], 0
    // Predicated region
    $region2: #{tpu_custom_call.1} parent=1 // pred_check
      _
    $region3: #{tpu_custom_call.1} parent=1 // pred_check_branch
      %9 = sbr.rel (0) target = $region5
    $region4: #{tpu_custom_call.1} parent=1 // pred_region
      %s11 = ssub.s32 256, 256
      %12 = vsyncadd [#allocation3], %s11
      %s14 = sshll.u32 [#allocation2], 4
      %s15 = int_to_ptr.vmem [resolvable:$true] %s14
      %17 = dma.hbm_to_vmem [thread:$0]  %s0, 256, %s15, [#allocation3]
    $region5: #{tpu_custom_call.1} parent=1 // pred_fallthru
      _
    // Predicated region
    $region6: #{tpu_custom_call.1} parent=1 // pred_check
      _
    $region7: #{tpu_custom_call.1} parent=1 // pred_check_branch
      %19 = sbr.rel (0) target = $region9
    $region8: #{tpu_custom_call.1} parent=1 // pred_region
      %20 = dma.done [#allocation3], 256
    $region9: #{tpu_custom_call.1} parent=1 // pred_fallthru
      _
    %v21 = vld [vmem:[#allocation2] sm:$0xff]
    %v22 = vld [vmem:[#allocation2 + $0x8] sm:$0xff]
    %23 = vst [vmem:[#allocation5] sm:$0xff] %v21
    %24 = vst [vmem:[#allocation5 + $0x8] sm:$0xff] %v22
    // Predicated region
    $region10: #{tpu_custom_call.1} parent=1 // pred_check
      _
    $region11: #{tpu_custom_call.1} parent=1 // pred_check_branch
      %26 = sbr.rel (0) target = $region13
    $region12: #{tpu_custom_call.1} parent=1 // pred_region
      %s28 = ssub.s32 256, 256
      %29 = vsyncadd [#allocation4], %s28
      %s31 = sshll.u32 [#allocation5], 4
      %s32 = int_to_ptr.vmem [resolvable:$true] %s31
      %34 = dma.vmem_to_hbm [thread:$0]  %s32, 256, %s1, [#allocation4]
    $region13: #{tpu_custom_call.1} parent=1 // pred_fallthru
      _
    // Predicated region
    $region14: #{tpu_custom_call.1} parent=1 // pred_check
      _
    $region15: #{tpu_custom_call.1} parent=1 // pred_check_branch
      %36 = sbr.rel (0) target = $region17
    $region16: #{tpu_custom_call.1} parent=1 // pred_region
      %37 = dma.done [#allocation4], 256
    $region17: #{tpu_custom_call.1} parent=1 // pred_fallthru
      _
    %38 = vsyncpa [#allocation3], 1
    %39 = vsyncpa [#allocation4], 1

</llo_original>
